<compile_context>
chip_gen: v7x
topology: tpu7x:2x2x1
jax: 0.10.0
libtpu: 0.0.40
codegen_flags: <defaults>
</compile_context>

<pallas_src>
import jax
import jax.numpy as jnp
from jax.experimental import pallas as pl
from jax.experimental.pallas import tpu as pltpu


def _round_up(x, m):
    return (x + m - 1) // m * m


def _simsiam_head_kernel(z_ref, w1t_ref, gamma_ref, beta_ref, w2wc_ref, bc_ref,
                         out_ref):
    # z:    [TN, D]    (compute dtype, streamed tile)
    # w1t:  [D, H]     (compute dtype, VMEM-resident)
    # gamma/beta: [1, H] f32
    # w2wc: [H, C_pad] (compute dtype, fused W2^T @ Wc^T, VMEM-resident)
    # bc:   [1, C_pad] f32
    # out:  [TN, C_pad]
    h1 = jnp.dot(z_ref[...], w1t_ref[...],
                 preferred_element_type=jnp.float32)              # [TN, H] f32

    # LayerNorm (eps=1e-5, affine) with var = E[x^2] - mean^2 and the affine
    # folded into per-row scale/shift; ReLU fused into the same elementwise pass.
    mean = jnp.mean(h1, axis=-1, keepdims=True)                   # [TN, 1]
    mean_sq = jnp.mean(h1 * h1, axis=-1, keepdims=True)           # [TN, 1]
    rstd = jax.lax.rsqrt(mean_sq - mean * mean + 1e-5)            # EUP rsqrt
    scale = gamma_ref[...] * rstd                                 # [TN, H]
    shift = beta_ref[...] - mean * scale                          # [TN, H]
    r = jnp.maximum(h1 * scale + shift, 0.0).astype(w2wc_ref.dtype)

    # Fused projector.w2 + classifier: one K=H MXU matmul, lane-dense output.
    logits = jnp.dot(r, w2wc_ref[...],
                     preferred_element_type=jnp.float32)          # [TN, C_pad]
    out_ref[...] = (logits + bc_ref[...]).astype(out_ref.dtype)


def simsiam_node_classification_forward(z, w1, gamma, beta, w2, wc, bc, *,
                                        block_n=1024,
                                        compute_dtype=jnp.bfloat16,
                                        out_dtype=None,
                                        min_grid=2):
    """z: [N, D] encoder output. Weights are PyTorch-layout ([out, in]).

    Returns logits [N, num_classes] in `out_dtype` (defaults to compute_dtype).
    """
    N, D = z.shape
    H = w1.shape[0]
    C = wc.shape[0]
    C_pad = _round_up(max(C, 128), 128)
    out_dtype = compute_dtype if out_dtype is None else out_dtype
    f32 = jnp.float32

    # Adaptive node tile: balance rows across the tile count so padded (dead)
    # rows stay under one tile; multiple of 16 keeps bf16 sublane packing
    # unmasked; grid >= min_grid so the "parallel" axis feeds both v7x cores.
    num_tiles = max(min_grid, pl.cdiv(N, block_n))
    TN = _round_up(pl.cdiv(N, num_tiles), 16)
    N_pad = TN * num_tiles

    # Single-pass input prep: cast to the streaming dtype, then pad once.
    z_p = jnp.pad(z.astype(compute_dtype), ((0, N_pad - N), (0, 0)))

    # One-time weight prep (f32 math, single cast to compute dtype).
    w1t = w1.astype(f32).T.astype(compute_dtype)                   # [D, H]
    w2wc_f32 = w2.astype(f32).T @ wc.astype(f32).T                 # [H, C]
    w2wc = (jnp.zeros((H, C_pad), f32).at[:, :C].set(w2wc_f32)
            .astype(compute_dtype))                                # [H, C_pad]
    bc_p = jnp.zeros((1, C_pad), f32).at[:, :C].set(bc.astype(f32).reshape(1, C))
    gamma2 = gamma.astype(f32).reshape(1, H)
    beta2 = beta.astype(f32).reshape(1, H)

    in_size = jnp.dtype(compute_dtype).itemsize
    out_size = jnp.dtype(out_dtype).itemsize
    cost = pl.CostEstimate(
        flops=2 * N_pad * H * (D + C_pad),           # fused: one K=D + one K=H matmul
        transcendentals=N_pad,                       # one rsqrt per node row
        bytes_accessed=(N_pad * D * in_size          # z stream (read)
                        + N_pad * C_pad * out_size   # logits (write)
                        + (D * H + H * C_pad) * in_size   # resident weights
                        + (2 * H + C_pad) * 4),      # gamma/beta/bias (f32)
    )

    out = pl.pallas_call(
        _simsiam_head_kernel,
        out_shape=jax.ShapeDtypeStruct((N_pad, C_pad), out_dtype),
        grid=(num_tiles,),
        in_specs=[
            pl.BlockSpec((TN, D), lambda i: (i, 0)),        # z: streamed per tile
            pl.BlockSpec((D, H), lambda i: (0, 0)),         # w1^T: VMEM-resident
            pl.BlockSpec((1, H), lambda i: (0, 0)),         # gamma
            pl.BlockSpec((1, H), lambda i: (0, 0)),         # beta
            pl.BlockSpec((H, C_pad), lambda i: (0, 0)),     # fused w2wc (padded)
            pl.BlockSpec((1, C_pad), lambda i: (0, 0)),     # bc (padded)
        ],
        out_specs=pl.BlockSpec((TN, C_pad), lambda i: (i, 0)),
        compiler_params=pltpu.CompilerParams(
            dimension_semantics=("parallel",)),
        cost_estimate=cost,
    )(z_p, w1t, gamma2, beta2, w2wc, bc_p)

    return out[:N, :C]


def _xavier_normal(key, shape, gain):
    # shape = (fan_out, fan_in) as in nn.Linear.weight
    fan_out, fan_in = shape
    std = gain * (2.0 / (fan_in + fan_out)) ** 0.5
    return std * jax.random.normal(key, shape, dtype=jnp.float32)


def _reference_jax(z, w1, gamma, beta, w2, wc, bc):
    h1 = z @ w1.T
    mean = jnp.mean(h1, axis=-1, keepdims=True)
    var = jnp.mean((h1 - mean) ** 2, axis=-1, keepdims=True)
    ln = (h1 - mean) / jnp.sqrt(var + 1e-5) * gamma.reshape(1, -1) + beta.reshape(1, -1)
    r = jnp.maximum(ln, 0.0)
    p = r @ w2.T
    return p @ wc.T + bc.reshape(1, -1)


if __name__ == "__main__":
    # Small config consistent with the module: out_dim = config.hidden_dim,
    # projector hidden = 4 * out_dim, classifier -> num_classes.
    N = 384               # nodes in the batch
    D = 32                # config.hidden_dim (backbone_out_dim)
    H = 4 * D             # SimSiam / Projector hidden_dim
    C = 7                 # config.num_classes

    key = jax.random.PRNGKey(0)
    k_z, k_w1, k_w2, k_wc, k_bc = jax.random.split(key, 5)

    # TODO(synk): the GDT/RGDT sub-graph encoder backbone is not part of the
    # provided module source; `z` below stands in for its output embeddings.
    z = jax.random.normal(k_z, (N, D), dtype=jnp.float32)

    relu_gain = 2.0 ** 0.5  # nn.init.calculate_gain('relu')
    w1 = _xavier_normal(k_w1, (H, D), relu_gain)          # Projector.w1.weight
    w2 = _xavier_normal(k_w2, (D, H), relu_gain)          # Projector.w2.weight
    gamma = jnp.ones((H,), dtype=jnp.float32)             # LayerNorm.weight
    beta = jnp.zeros((H,), dtype=jnp.float32)             # LayerNorm.bias
    wc = _xavier_normal(k_wc, (C, D), 1.0)                # classifier weight
    bc = 0.01 * jax.random.normal(k_bc, (C,), dtype=jnp.float32)  # classifier bias

    ref = _reference_jax(z, w1, gamma, beta, w2, wc, bc)

    # 1) f32 path: tight check against the pure-JAX reference (exercises a
    #    3-step grid at block_n=128).
    logits_f32 = simsiam_node_classification_forward(
        z, w1, gamma, beta, w2, wc, bc,
        block_n=128, compute_dtype=jnp.float32)
    logits_f32 = jax.block_until_ready(logits_f32)
    assert logits_f32.shape == (N, C)
    assert jnp.allclose(logits_f32, ref, atol=1e-3, rtol=1e-3), "f32 kernel mismatch"

    # 2) bf16 streaming path (default / production config): bf16 inputs,
    #    weights and output, f32 MXU accumulation + LayerNorm statistics.
    logits_bf16 = simsiam_node_classification_forward(
        z, w1, gamma, beta, w2, wc, bc,
        compute_dtype=jnp.bfloat16)
    logits_bf16 = jax.block_until_ready(logits_bf16)
    assert logits_bf16.shape == (N, C)
    assert jnp.allclose(logits_bf16.astype(jnp.float32), ref,
                        atol=5e-2, rtol=5e-2), "bf16 kernel mismatch"

    print("KERNEL_OK")
</pallas_src>

<mosaic_0001>
module attributes {stable_mosaic.version = 11 : i64} {
  func.func @_simsiam_head_kernel(%arg0: i32, %arg1: memref<128x32xf32, #tpu.memory_space<vmem>>, %arg2: memref<32x128xf32, #tpu.memory_space<vmem>>, %arg3: memref<1x128xf32, #tpu.memory_space<vmem>>, %arg4: memref<1x128xf32, #tpu.memory_space<vmem>>, %arg5: memref<128x128xf32, #tpu.memory_space<vmem>>, %arg6: memref<1x128xf32, #tpu.memory_space<vmem>>, %arg7: memref<128x128xf32, #tpu.memory_space<vmem>>) attributes {dimension_semantics = [#tpu.dimension_semantics<parallel>], iteration_bounds = array<i64: 3>, scalar_prefetch = 0 : i64, scratch_operands = 0 : i64, tpu.core_type = #tpu.core_type<tc>, window_params = [{transform_indices = @transform_0, window_bounds = array<i64: 128, 32>}, {pipeline_mode = #tpu.pipeline_mode<synchronous>, transform_indices = @transform_1, window_bounds = array<i64: 32, 128>}, {pipeline_mode = #tpu.pipeline_mode<synchronous>, transform_indices = @transform_2, window_bounds = array<i64: 1, 128>}, {pipeline_mode = #tpu.pipeline_mode<synchronous>, transform_indices = @transform_3, window_bounds = array<i64: 1, 128>}, {pipeline_mode = #tpu.pipeline_mode<synchronous>, transform_indices = @transform_4, window_bounds = array<i64: 128, 128>}, {pipeline_mode = #tpu.pipeline_mode<synchronous>, transform_indices = @transform_5, window_bounds = array<i64: 1, 128>}, {transform_indices = @transform_6, window_bounds = array<i64: 128, 128>}]} {
    %c0 = arith.constant 0 : index
    %c0_0 = arith.constant 0 : index
    %0 = vector.load %arg1[%c0, %c0_0] : memref<128x32xf32, #tpu.memory_space<vmem>>, vector<128x32xf32>
    %c0_1 = arith.constant 0 : index
    %c0_2 = arith.constant 0 : index
    %1 = vector.load %arg2[%c0_1, %c0_2] : memref<32x128xf32, #tpu.memory_space<vmem>>, vector<32x128xf32>
    %cst = arith.constant dense<0.000000e+00> : vector<128x128xf32>
    %2 = tpu.matmul %0, %1, %cst {dimension_numbers = #tpu.dot_dimension_numbers<[1], [0], [0], [1], [0, 0, 1, 1], [], []>} : vector<128x32xf32>, vector<32x128xf32>, vector<128x128xf32> -> vector<128x128xf32>
    %cst_3 = arith.constant dense<0.000000e+00> : vector<128xf32>
    %3 = vector.multi_reduction <add>, %2, %cst_3 [1] : vector<128x128xf32> to vector<128xf32>
    %4 = vector.shape_cast %3 : vector<128xf32> to vector<128x1xf32>
    %cst_4 = arith.constant 1.280000e+02 : f32
    %5 = vector.broadcast %cst_4 : f32 to vector<128x1xf32>
    %6 = arith.divf %4, %5 : vector<128x1xf32>
    %7 = arith.mulf %2, %2 : vector<128x128xf32>
    %cst_5 = arith.constant dense<0.000000e+00> : vector<128xf32>
    %8 = vector.multi_reduction <add>, %7, %cst_5 [1] : vector<128x128xf32> to vector<128xf32>
    %9 = vector.shape_cast %8 : vector<128xf32> to vector<128x1xf32>
    %cst_6 = arith.constant 1.280000e+02 : f32
    %10 = vector.broadcast %cst_6 : f32 to vector<128x1xf32>
    %11 = arith.divf %9, %10 : vector<128x1xf32>
    %12 = arith.mulf %6, %6 : vector<128x1xf32>
    %13 = arith.subf %11, %12 : vector<128x1xf32>
    %cst_7 = arith.constant 9.99999974E-6 : f32
    %14 = vector.broadcast %cst_7 : f32 to vector<128x1xf32>
    %15 = arith.addf %13, %14 : vector<128x1xf32>
    %16 = math.rsqrt %15 : vector<128x1xf32>
    %c0_8 = arith.constant 0 : index
    %c0_9 = arith.constant 0 : index
    %17 = vector.load %arg3[%c0_8, %c0_9] : memref<1x128xf32, #tpu.memory_space<vmem>>, vector<1x128xf32>
    %18 = vector.broadcast %17 : vector<1x128xf32> to vector<128x128xf32>
    %19 = vector.broadcast %16 : vector<128x1xf32> to vector<128x128xf32>
    %20 = arith.mulf %18, %19 : vector<128x128xf32>
    %c0_10 = arith.constant 0 : index
    %c0_11 = arith.constant 0 : index
    %21 = vector.load %arg4[%c0_10, %c0_11] : memref<1x128xf32, #tpu.memory_space<vmem>>, vector<1x128xf32>
    %22 = vector.broadcast %6 : vector<128x1xf32> to vector<128x128xf32>
    %23 = arith.mulf %22, %20 : vector<128x128xf32>
    %24 = vector.broadcast %21 : vector<1x128xf32> to vector<128x128xf32>
    %25 = arith.subf %24, %23 : vector<128x128xf32>
    %26 = arith.mulf %2, %20 : vector<128x128xf32>
    %27 = arith.addf %26, %25 : vector<128x128xf32>
    %cst_12 = arith.constant 0.000000e+00 : f32
    %28 = vector.broadcast %cst_12 : f32 to vector<128x128xf32>
    %29 = arith.maximumf %27, %28 : vector<128x128xf32>
    %c0_13 = arith.constant 0 : index
    %c0_14 = arith.constant 0 : index
    %30 = vector.load %arg5[%c0_13, %c0_14] : memref<128x128xf32, #tpu.memory_space<vmem>>, vector<128x128xf32>
    %cst_15 = arith.constant dense<0.000000e+00> : vector<128x128xf32>
    %31 = tpu.matmul %29, %30, %cst_15 {dimension_numbers = #tpu.dot_dimension_numbers<[1], [0], [0], [1], [0, 0, 1, 1], [], []>} : vector<128x128xf32>, vector<128x128xf32>, vector<128x128xf32> -> vector<128x128xf32>
    %c0_16 = arith.constant 0 : index
    %c0_17 = arith.constant 0 : index
    %32 = vector.load %arg6[%c0_16, %c0_17] : memref<1x128xf32, #tpu.memory_space<vmem>>, vector<1x128xf32>
    %33 = vector.broadcast %32 : vector<1x128xf32> to vector<128x128xf32>
    %34 = arith.addf %31, %33 : vector<128x128xf32>
    %c0_18 = arith.constant 0 : index
    %c0_19 = arith.constant 0 : index
    %35 = vector.load %arg7[%c0_18, %c0_19] : memref<128x128xf32, #tpu.memory_space<vmem>>, vector<128x128xf32>
    tpu.vector_store %arg7[%c0_18, %c0_19], %34 {strides = array<i32>} : memref<128x128xf32, #tpu.memory_space<vmem>>, vector<128x128xf32>,
    return
  }
  func.func @transform_0(%arg0: i32) -> (i32, i32) {
    %c0_i32 = arith.constant 0 : i32
    %c0_i32_0 = arith.constant 0 : i32
    return %arg0, %c0_i32 : i32, i32
  }
  func.func @transform_1(%arg0: i32) -> (i32, i32) {
    %c0_i32 = arith.constant 0 : i32
    %c0_i32_0 = arith.constant 0 : i32
    %c0_i32_1 = arith.constant 0 : i32
    return %c0_i32, %c0_i32_0 : i32, i32
  }
  func.func @transform_2(%arg0: i32) -> (i32, i32) {
    %c0_i32 = arith.constant 0 : i32
    %c0_i32_0 = arith.constant 0 : i32
    %c0_i32_1 = arith.constant 0 : i32
    return %c0_i32, %c0_i32_0 : i32, i32
  }
  func.func @transform_3(%arg0: i32) -> (i32, i32) {
    %c0_i32 = arith.constant 0 : i32
    %c0_i32_0 = arith.constant 0 : i32
    %c0_i32_1 = arith.constant 0 : i32
    return %c0_i32, %c0_i32_0 : i32, i32
  }
  func.func @transform_4(%arg0: i32) -> (i32, i32) {
    %c0_i32 = arith.constant 0 : i32
    %c0_i32_0 = arith.constant 0 : i32
    %c0_i32_1 = arith.constant 0 : i32
    return %c0_i32, %c0_i32_0 : i32, i32
  }
  func.func @transform_5(%arg0: i32) -> (i32, i32) {
    %c0_i32 = arith.constant 0 : i32
    %c0_i32_0 = arith.constant 0 : i32
    %c0_i32_1 = arith.constant 0 : i32
    return %c0_i32, %c0_i32_0 : i32, i32
  }
  func.func @transform_6(%arg0: i32) -> (i32, i32) {
    %c0_i32 = arith.constant 0 : i32
    %c0_i32_0 = arith.constant 0 : i32
    return %arg0, %c0_i32 : i32, i32
  }
}

</mosaic_0001>

<llo_original>
// kernel: tpu_custom_call.1
$region0: #{tpu_custom_call.1}
  #allocation0 [shape = 'u32[]', space=smem, size = 0x4, offset = 0x4, fixed_abs, tag = 'smem constant byte address 0x4 - core index']
  #allocation1 [shape = 'u32[144,128]{1,0:T(1,128)}', space=vmem, size = 0x12000, scoped, tag = 'internal scratch']
  %s0 = inlined_call_operand.vmem [shape: f32[384,32], index: 0, kind: input, shape index: {}]
  %s1 = inlined_call_operand.vmem [shape: f32[32,128], index: 1, kind: input, shape index: {}]
  %s2 = inlined_call_operand.vmem [shape: f32[1,128], index: 2, kind: input, shape index: {}]
  %s3 = inlined_call_operand.vmem [shape: f32[1,128], index: 3, kind: input, shape index: {}]
  %s4 = inlined_call_operand.vmem [shape: f32[128,128], index: 4, kind: input, shape index: {}]
  %s5 = inlined_call_operand.vmem [shape: f32[1,128], index: 5, kind: input, shape index: {}]
  %s6 = inlined_call_operand.hbm [shape: f32[384,128], index: 6, kind: output, shape index: {}]
  %s7 = sld [smem:[#allocation0]]
  $region57: #{tpu_custom_call.1} parent=0
    _
  %s9 = ssub.s32 1, %s7
  %s10 = scalar_select 0, %s9, %s7
  $region1: #{tpu_custom_call.1} parent=0
    #allocation2 [shape = 'u8[131072]{0}', space=vmem, size = 0x20000, scoped, tag = 'output window, operand 0']
    #allocation3 [shape = 's32[2]{0}', space=sflag, size = 0x8, scoped, tag = 'scoped memory for tpu_custom_call.1']
    %11 = vsyncpa [#allocation3], 0
    %s12 = scalar_lea.sflag [#allocation3], 1
    %13 = vsyncpa %s12, 0
    loop: start=0, step=1, limit=5
    $region2: #{tpu_custom_call.1} parent=1 // loop_pre_header
      _
    $region3: #{tpu_custom_call.1} parent=1 // loop_header
      %s15 = sphi 0, %s19
      %p16 = scmp.ge.s32.totalorder %s15, 5
      %s25 = sphi 0, %s27
      %s28 = sphi 0, %s25
      %s29 = sphi 0, %s28
      %s45 = sphi 0, %s29
      %s49 = sphi 0, %s49
      %s51 = sphi 0, %s49
      %s52 = sphi 0, %s51
      %s66 = sphi 0, %s52
      %s70 = sphi 0, %s70
      %s72 = sphi 0, %s70
      %s73 = sphi 0, %s72
      %s87 = sphi 0, %s73
      %s91 = sphi 0, %s91
      %s93 = sphi 0, %s91
      %s94 = sphi 0, %s93
      %s108 = sphi 0, %s94
      %s112 = sphi 0, %s112
      %s114 = sphi 0, %s112
      %s115 = sphi 0, %s114
      %s129 = sphi 0, %s115
      %s133 = sphi 0, %s133
      %s135 = sphi 0, %s133
      %s136 = sphi 0, %s135
      %s150 = sphi 0, %s136
      %s156 = sphi 0, %s158
      %s159 = sphi 0, %s156
      %s160 = sphi 0, %s159
      %s176 = sphi 0, %s160
    $region4: #{tpu_custom_call.1} parent=1 // loop_header_branch
      %18 = sbr.rel (%p16) target = $region8
    $region5: #{tpu_custom_call.1} parent=1 // loop_body
      %s20 = ssub.s32 %s15, 1
      %s21 = ssub.s32 %s15, 2
      %s22 = sadd.s32 %s15, 1
      %s23 = ssub.s32 %s15, %s22
      %p24 = scmp.eq.s32.totalorder %s23, 0
      %s26 = sadd.s32 %s25, 1
      %s27 = scalar_select %p24, %s25, %s26
      %p30 = pneg %p24
      %p31 = scmp.eq.s32.totalorder %s15, 2
      %p32 = por %p30, %p31
      %p33 = scmp.ne.s32.totalorder %s25, %s28
      %p34 = scmp.eq.s32.totalorder %s15, 0
      %p35 = por %p33, %p34
      %p36 = scmp.ne.s32.totalorder %s25, %s28
      %p37 = scmp.eq.s32.totalorder %s20, 2
      %p38 = por %p36, %p37
      %p39 = scmp.ne.s32.totalorder %s28, %s29
      %p40 = scmp.eq.s32.totalorder %s20, 0
      %p41 = por %p39, %p40
      %p42 = scmp.ne.s32.totalorder %s28, %s29
      %p43 = scmp.eq.s32.totalorder %s21, 2
      %p44 = por %p42, %p43
      %p46 = scmp.ne.s32.totalorder %s29, %s45
      %p47 = scmp.eq.s32.totalorder %s21, 0
      %p48 = por %p46, %p47
      %s50 = sadd.s32 %s49, 1
      %p53 = scmp.eq.s32.totalorder %s15, 2
      %p54 = scmp.ne.s32.totalorder %s49, %s51
      %p55 = scmp.eq.s32.totalorder %s15, 0
      %p56 = por %p54, %p55
      %p57 = scmp.ne.s32.totalorder %s49, %s51
      %p58 = scmp.eq.s32.totalorder %s20, 2
      %p59 = por %p57, %p58
      %p60 = scmp.ne.s32.totalorder %s51, %s52
      %p61 = scmp.eq.s32.totalorder %s20, 0
      %p62 = por %p60, %p61
      %p63 = scmp.ne.s32.totalorder %s51, %s52
      %p64 = scmp.eq.s32.totalorder %s21, 2
      %p65 = por %p63, %p64
      %p67 = scmp.ne.s32.totalorder %s52, %s66
      %p68 = scmp.eq.s32.totalorder %s21, 0
      %p69 = por %p67, %p68
      %s71 = sadd.s32 %s70, 1
      %p74 = scmp.eq.s32.totalorder %s15, 2
      %p75 = scmp.ne.s32.totalorder %s70, %s72
      %p76 = scmp.eq.s32.totalorder %s15, 0
      %p77 = por %p75, %p76
      %p78 = scmp.ne.s32.totalorder %s70, %s72
      %p79 = scmp.eq.s32.totalorder %s20, 2
      %p80 = por %p78, %p79
      %p81 = scmp.ne.s32.totalorder %s72, %s73
      %p82 = scmp.eq.s32.totalorder %s20, 0
      %p83 = por %p81, %p82
      %p84 = scmp.ne.s32.totalorder %s72, %s73
      %p85 = scmp.eq.s32.totalorder %s21, 2
      %p86 = por %p84, %p85
      %p88 = scmp.ne.s32.totalorder %s73, %s87
      %p89 = scmp.eq.s32.totalorder %s21, 0
      %p90 = por %p88, %p89
      %s92 = sadd.s32 %s91, 1
      %p95 = scmp.eq.s32.totalorder %s15, 2
      %p96 = scmp.ne.s32.totalorder %s91, %s93
      %p97 = scmp.eq.s32.totalorder %s15, 0
      %p98 = por %p96, %p97
      %p99 = scmp.ne.s32.totalorder %s91, %s93
      %p100 = scmp.eq.s32.totalorder %s20, 2
      %p101 = por %p99, %p100
      %p102 = scmp.ne.s32.totalorder %s93, %s94
      %p103 = scmp.eq.s32.totalorder %s20, 0
      %p104 = por %p102, %p103
      %p105 = scmp.ne.s32.totalorder %s93, %s94
      %p106 = scmp.eq.s32.totalorder %s21, 2
      %p107 = por %p105, %p106
      %p109 = scmp.ne.s32.totalorder %s94, %s108
      %p110 = scmp.eq.s32.totalorder %s21, 0
      %p111 = por %p109, %p110
      %s113 = sadd.s32 %s112, 1
      %p116 = scmp.eq.s32.totalorder %s15, 2
      %p117 = scmp.ne.s32.totalorder %s112, %s114
      %p118 = scmp.eq.s32.totalorder %s15, 0
      %p119 = por %p117, %p118
      %p120 = scmp.ne.s32.totalorder %s112, %s114
      %p121 = scmp.eq.s32.totalorder %s20, 2
      %p122 = por %p120, %p121
      %p123 = scmp.ne.s32.totalorder %s114, %s115
      %p124 = scmp.eq.s32.totalorder %s20, 0
      %p125 = por %p123, %p124
      %p126 = scmp.ne.s32.totalorder %s114, %s115
      %p127 = scmp.eq.s32.totalorder %s21, 2
      %p128 = por %p126, %p127
      %p130 = scmp.ne.s32.totalorder %s115, %s129
      %p131 = scmp.eq.s32.totalorder %s21, 0
      %p132 = por %p130, %p131
      %s134 = sadd.s32 %s133, 1
      %p137 = scmp.eq.s32.totalorder %s15, 2
      %p138 = scmp.ne.s32.totalorder %s133, %s135
      %p139 = scmp.eq.s32.totalorder %s15, 0
      %p140 = por %p138, %p139
      %p141 = scmp.ne.s32.totalorder %s133, %s135
      %p142 = scmp.eq.s32.totalorder %s20, 2
      %p143 = por %p141, %p142
      %p144 = scmp.ne.s32.totalorder %s135, %s136
      %p145 = scmp.eq.s32.totalorder %s20, 0
      %p146 = por %p144, %p145
      %p147 = scmp.ne.s32.totalorder %s135, %s136
      %p148 = scmp.eq.s32.totalorder %s21, 2
      %p149 = por %p147, %p148
      %p151 = scmp.ne.s32.totalorder %s136, %s150
      %p152 = scmp.eq.s32.totalorder %s21, 0
      %p153 = por %p151, %p152
      %s154 = ssub.s32 %s15, %s22
      %p155 = scmp.eq.s32.totalorder %s154, 0
      %s157 = sadd.s32 %s156, 1
      %s158 = scalar_select %p155, %s156, %s157
      %p161 = pneg %p155
      %p162 = scmp.eq.s32.totalorder %s15, 2
      %p163 = por %p161, %p162
      %p164 = scmp.ne.s32.totalorder %s156, %s159
      %p165 = scmp.eq.s32.totalorder %s15, 0
      %p166 = por %p164, %p165
      %p167 = scmp.ne.s32.totalorder %s156, %s159
      %p168 = scmp.eq.s32.totalorder %s20, 2
      %p169 = por %p167, %p168
      %p170 = scmp.ne.s32.totalorder %s159, %s160
      %p171 = scmp.eq.s32.totalorder %s20, 0
      %p172 = por %p170, %p171
      %p173 = scmp.ne.s32.totalorder %s159, %s160
      %p174 = scmp.eq.s32.totalorder %s21, 2
      %p175 = por %p173, %p174
      %p177 = scmp.ne.s32.totalorder %s160, %s176
      %p178 = scmp.eq.s32.totalorder %s21, 0
      %p179 = por %p177, %p178
      %p180 = scmp.le.s32.totalorder 1, %s15
      %p181 = scmp.lt.s32.totalorder %s15, 4
      %p182 = pnand %p180, %p181
      %p183 = pneg %p182
      // Predicated region
      $region9: #{tpu_custom_call.1} parent=5 // pred_check
        _
      $region10: #{tpu_custom_call.1} parent=5 // pred_check_branch
        %185 = sbr.rel (%p182) target = $region12
      $region11: #{tpu_custom_call.1} parent=5 // pred_region
        %s186 = ssub.s32 %s15, 1
        // Predicated region
        $region13: #{tpu_custom_call.1} parent=11 // pred_check
          %p187 = pneg %p62
        $region14: #{tpu_custom_call.1} parent=11 // pred_check_branch
          %189 = sbr.rel (%p187) target = $region16
        $region15: #{tpu_custom_call.1} parent=11 // pred_region
          _
        $region16: #{tpu_custom_call.1} parent=11 // pred_fallthru
          _
        // Predicated region
        $region17: #{tpu_custom_call.1} parent=11 // pred_check
          %p190 = pneg %p83
        $region18: #{tpu_custom_call.1} parent=11 // pred_check_branch
          %192 = sbr.rel (%p190) target = $region20
        $region19: #{tpu_custom_call.1} parent=11 // pred_region
          _
        $region20: #{tpu_custom_call.1} parent=11 // pred_fallthru
          _
        // Predicated region
        $region21: #{tpu_custom_call.1} parent=11 // pred_check
          %p193 = pneg %p104
        $region22: #{tpu_custom_call.1} parent=11 // pred_check_branch
          %195 = sbr.rel (%p193) target = $region24
        $region23: #{tpu_custom_call.1} parent=11 // pred_region
          _
        $region24: #{tpu_custom_call.1} parent=11 // pred_fallthru
          _
        // Predicated region
        $region25: #{tpu_custom_call.1} parent=11 // pred_check
          %p196 = pneg %p125
        $region26: #{tpu_custom_call.1} parent=11 // pred_check_branch
          %198 = sbr.rel (%p196) target = $region28
        $region27: #{tpu_custom_call.1} parent=11 // pred_region
          _
        $region28: #{tpu_custom_call.1} parent=11 // pred_fallthru
          _
        // Predicated region
        $region29: #{tpu_custom_call.1} parent=11 // pred_check
          %p199 = pneg %p146
        $region30: #{tpu_custom_call.1} parent=11 // pred_check_branch
          %201 = sbr.rel (%p199) target = $region32
        $region31: #{tpu_custom_call.1} parent=11 // pred_region
          _
        $region32: #{tpu_custom_call.1} parent=11 // pred_fallthru
          _
      $region12: #{tpu_custom_call.1} parent=5 // pred_fallthru
        _
      %p202 = scmp.lt.s32.totalorder %s15, 3
      // Predicated region
      $region33: #{tpu_custom_call.1} parent=5 // pred_check
        %p203 = pneg %p202
      $region34: #{tpu_custom_call.1} parent=5 // pred_check_branch
        %205 = sbr.rel (%p203) target = $region36
      $region35: #{tpu_custom_call.1} parent=5 // pred_region
        // Predicated region
        $region37: #{tpu_custom_call.1} parent=35 // pred_check
          %p206 = pneg %p35
        $region38: #{tpu_custom_call.1} parent=35 // pred_check_branch
          %208 = sbr.rel (%p206) target = $region40
        $region39: #{tpu_custom_call.1} parent=35 // pred_region
          %s209 = smul.u32 16, %s15
          %p210 = scmp.lt.s32.totalorder %s209, 47
          %s211 = scalar_select %p210, %s209, 47
          %s212 = smul.addr %s211, 8
          %s213 = scalar_lea.vmem %s0, %s212
          %s214 = smul.u32 16, %s15
        $region40: #{tpu_custom_call.1} parent=35 // pred_fallthru
          _
      $region36: #{tpu_custom_call.1} parent=5 // pred_fallthru
        _
      %p215 = scmp.le.s32.totalorder 1, %s15
      %p216 = scmp.lt.s32.totalorder %s15, 4
      %p217 = pnand %p215, %p216
      %p218 = pneg %p217
      // Predicated region
      $region41: #{tpu_custom_call.1} parent=5 // pred_check
        _
      $region42: #{tpu_custom_call.1} parent=5 // pred_check_branch
        %220 = sbr.rel (%p217) target = $region44
      $region43: #{tpu_custom_call.1} parent=5 // pred_region
        %s221 = ssub.s32 %s15, 1
        %s222 = smul.u32 16, %s20
        %p223 = scmp.lt.s32.totalorder %s222, 47
        %s224 = scalar_select %p223, %s222, 47
        %s225 = smul.addr %s224, 8
        %s226 = scalar_lea.vmem %s0, %s225
        %p227 = pneg %p41
        %p228 = pneg %p38
        %p229 = pneg %p62
        %p230 = pneg %p59
        %p231 = pneg %p83
        %p232 = pneg %p80
        %p233 = pneg %p104
        %p234 = pneg %p101
        %p235 = pneg %p125
        %p236 = pneg %p122
        %p237 = pneg %p146
        %p238 = pneg %p143
        %p239 = pneg %p172
        %p240 = pneg %p169
        %s241 = sand.u32 %s159, 1
        %s242 = scalar_lea.sflag [#allocation3], %s241
        %s243 = sand.u32 %s159, 1
        %s244 = smul.addr %s243, 128
        %s245 = scalar_lea.vmem [#allocation2], %s244
        %s246 = smul.u32 16, %s20
        %p247 = scmp.lt.s32.totalorder %s246, 47
        %s248 = scalar_select %p247, %s246, 47
        %s249 = smul.addr %s248, 8
        %s250 = scalar_lea.vmem %s0, %s249
        %s251 = smul.u32 16, %s20
        %s252 = smul.u32 16, %s20
        %v253 = vld [vmem:[%s250] sm:$0xff]
        %v254 = vld [vmem:[%s250 + $0x8] sm:$0xff]
        %v255 = vld [vmem:[%s250 + $0x10] sm:$0xff]
        %v256 = vld [vmem:[%s250 + $0x18] sm:$0xff]
        %v257 = vld [vmem:[%s250 + $0x20] sm:$0xff]
        %v258 = vld [vmem:[%s250 + $0x28] sm:$0xff]
        %v259 = vld [vmem:[%s250 + $0x30] sm:$0xff]
        %v260 = vld [vmem:[%s250 + $0x38] sm:$0xff]
        %v261 = vld [vmem:[%s250 + $0x40] sm:$0xff]
        %v262 = vld [vmem:[%s250 + $0x48] sm:$0xff]
        %v263 = vld [vmem:[%s250 + $0x50] sm:$0xff]
        %v264 = vld [vmem:[%s250 + $0x58] sm:$0xff]
        %v265 = vld [vmem:[%s250 + $0x60] sm:$0xff]
        %v266 = vld [vmem:[%s250 + $0x68] sm:$0xff]
        %v267 = vld [vmem:[%s250 + $0x70] sm:$0xff]
        %v268 = vld [vmem:[%s250 + $0x78] sm:$0xff]
        %v269 = vld [vmem:[%s1] sm:$0xff]
        %v270 = vld [vmem:[%s1 + $0x8] sm:$0xff]
        %v271 = vld [vmem:[%s1 + $0x10] sm:$0xff]
        %v272 = vld [vmem:[%s1 + $0x18] sm:$0xff]
        %vm273 = vcmask 261120
        %v275 = vsel %vm273, %v253, 0
        %v278 = vsel %vm273, %v254, 0
        %v281 = vsel %vm273, %v255, 0
        %v284 = vsel %vm273, %v256, 0
        %v287 = vsel %vm273, %v257, 0
        %v290 = vsel %vm273, %v258, 0
        %v293 = vsel %vm273, %v259, 0
        %v296 = vsel %vm273, %v260, 0
        %v299 = vsel %vm273, %v261, 0
        %v302 = vsel %vm273, %v262, 0
        %v305 = vsel %vm273, %v263, 0
        %v308 = vsel %vm273, %v264, 0
        %v311 = vsel %vm273, %v265, 0
        %v314 = vsel %vm273, %v266, 0
        %v317 = vsel %vm273, %v267, 0
        %v320 = vsel %vm273, %v268, 0
        %322 = vmatprep.subr.mxu0 0.0
        %323 = vmatpush1.msra.mxu0 %v269
        %324 = vmatprep.subr.mxu0 0.0
        %325 = vmatpush1.msra.mxu0 %v270
        %326 = vmatprep.subr.mxu0 0.0
        %327 = vmatpush1.msra.mxu0 %v271
        %328 = vmatprep.subr.mxu0 0.0
        %329 = vmatpush1.msra.mxu0 %v272
        %330 = vmatprep.subr.mxu0 0.0
        %331 = vmatpush1.msra.mxu0 0.0
        %332 = vmatprep.subr.mxu0 0.0
        %333 = vmatpush1.msra.mxu0 0.0
        %334 = vmatprep.subr.mxu0 0.0
        %335 = vmatpush1.msra.mxu0 0.0
        %336 = vmatprep.subr.mxu0 0.0
        %337 = vmatpush1.msra.mxu0 0.0
        %338 = vmatprep.subr.mxu0 0.0
        %339 = vmatpush1.msra.mxu0 0.0
        %340 = vmatprep.subr.mxu0 0.0
        %341 = vmatpush1.msra.mxu0 0.0
        %342 = vmatprep.subr.mxu0 0.0
        %343 = vmatpush1.msra.mxu0 0.0
        %344 = vmatprep.subr.mxu0 0.0
        %345 = vmatpush1.msra.mxu0 0.0
        %346 = vmatprep.subr.mxu0 0.0
        %347 = vmatpush1.msra.mxu0 0.0
        %348 = vmatprep.subr.mxu0 0.0
        %349 = vmatpush1.msra.mxu0 0.0
        %350 = vmatprep.subr.mxu0 0.0
        %351 = vmatpush1.msra.mxu0 0.0
        %352 = vmatprep.subr.mxu0 0.0
        %353 = vmatpush1.msra.mxu0 0.0
        %354 = vmatprep.subr.mxu0 0.0
        %355 = vmatpush1.msra.mxu0 0.0
        %356 = vmatprep.subr.mxu0 0.0
        %357 = vmatpush1.msra.mxu0 0.0
        %358 = vmatprep.subr.mxu0 0.0
        %359 = vmatpush1.msra.mxu0 0.0
        %360 = vmatprep.subr.mxu0 0.0
        %361 = vmatpush1.msra.mxu0 0.0
        %362 = vmatprep.subr.mxu0 0.0
        %363 = vmatpush1.msra.mxu0 0.0
        %364 = vmatprep.subr.mxu0 0.0
        %365 = vmatpush1.msra.mxu0 0.0
        %366 = vmatprep.subr.mxu0 0.0
        %367 = vmatpush1.msra.mxu0 0.0
        %368 = vmatprep.subr.mxu0 0.0
        %369 = vmatpush1.msra.mxu0 0.0
        %370 = vmatprep.subr.mxu0 0.0
        %371 = vmatpush1.msra.mxu0 0.0
        %372 = vmatprep.subr.mxu0 0.0
        %373 = vmatpush1.msra.mxu0 0.0
        %374 = vmatprep.subr.mxu0 0.0
        %375 = vmatpush1.msra.mxu0 0.0
        %376 = vmatprep.subr.mxu0 0.0
        %377 = vmatpush1.msra.mxu0 0.0
        %378 = vmatprep.subr.mxu0 0.0
        %379 = vmatpush1.msra.mxu0 0.0
        %380 = vmatprep.subr.mxu0 0.0
        %381 = vmatpush1.msra.mxu0 0.0
        %382 = vmatprep.subr.mxu0 0.0
        %383 = vmatpush1.msra.mxu0 0.0
        %384 = vmatprep.subr.mxu0 0.0
        %385 = vmatpush1.msra.mxu0 0.0
        %386 = vmatprep.mubr.f32.mxu0 0.0
        %387 = vmatmul.mubr.f32.gmra.mrb[0].mxu0 %v275
        %v388 = vpop.f32.mrb[0].mxu0
        %v389 = vadd.f32 0.0, %v388
        %v390 = vpop.f32.mrb[0].mxu0
        %391 = vmatprep.mubr.f32.mxu0 0.0
        %392 = vmatmul.mubr.f32.gmra.mrb[0].mxu0 %v278
        %v393 = vpop.f32.mrb[0].mxu0
        %v394 = vadd.f32 0.0, %v393
        %v395 = vpop.f32.mrb[0].mxu0
        %396 = vmatprep.mubr.f32.mxu0 0.0
        %397 = vmatmul.mubr.f32.gmra.mrb[0].mxu0 %v281
        %v398 = vpop.f32.mrb[0].mxu0
        %v399 = vadd.f32 0.0, %v398
        %v400 = vpop.f32.mrb[0].mxu0
        %401 = vmatprep.mubr.f32.mxu0 0.0
        %402 = vmatmul.mubr.f32.gmra.mrb[0].mxu0 %v284
        %v403 = vpop.f32.mrb[0].mxu0
        %v404 = vadd.f32 0.0, %v403
        %v405 = vpop.f32.mrb[0].mxu0
        %406 = vmatprep.mubr.f32.mxu0 0.0
        %407 = vmatmul.mubr.f32.gmra.mrb[0].mxu0 %v287
        %v408 = vpop.f32.mrb[0].mxu0
        %v409 = vadd.f32 0.0, %v408
        %v410 = vpop.f32.mrb[0].mxu0
        %411 = vmatprep.mubr.f32.mxu0 0.0
        %412 = vmatmul.mubr.f32.gmra.mrb[0].mxu0 %v290
        %v413 = vpop.f32.mrb[0].mxu0
        %v414 = vadd.f32 0.0, %v413
        %v415 = vpop.f32.mrb[0].mxu0
        %416 = vmatprep.mubr.f32.mxu0 0.0
        %417 = vmatmul.mubr.f32.gmra.mrb[0].mxu0 %v293
        %v418 = vpop.f32.mrb[0].mxu0
        %v419 = vadd.f32 0.0, %v418
        %v420 = vpop.f32.mrb[0].mxu0
        %421 = vmatprep.mubr.f32.mxu0 0.0
        %422 = vmatmul.mubr.f32.gmra.mrb[0].mxu0 %v296
        %v423 = vpop.f32.mrb[0].mxu0
        %v424 = vadd.f32 0.0, %v423
        %v425 = vpop.f32.mrb[0].mxu0
        %426 = vmatprep.mubr.f32.mxu0 0.0
        %427 = vmatmul.mubr.f32.gmra.mrb[0].mxu0 %v299
        %v428 = vpop.f32.mrb[0].mxu0
        %v429 = vadd.f32 0.0, %v428
        %v430 = vpop.f32.mrb[0].mxu0
        %431 = vmatprep.mubr.f32.mxu0 0.0
        %432 = vmatmul.mubr.f32.gmra.mrb[0].mxu0 %v302
        %v433 = vpop.f32.mrb[0].mxu0
        %v434 = vadd.f32 0.0, %v433
        %v435 = vpop.f32.mrb[0].mxu0
        %436 = vmatprep.mubr.f32.mxu0 0.0
        %437 = vmatmul.mubr.f32.gmra.mrb[0].mxu0 %v305
        %v438 = vpop.f32.mrb[0].mxu0
        %v439 = vadd.f32 0.0, %v438
        %v440 = vpop.f32.mrb[0].mxu0
        %441 = vmatprep.mubr.f32.mxu0 0.0
        %442 = vmatmul.mubr.f32.gmra.mrb[0].mxu0 %v308
        %v443 = vpop.f32.mrb[0].mxu0
        %v444 = vadd.f32 0.0, %v443
        %v445 = vpop.f32.mrb[0].mxu0
        %446 = vmatprep.mubr.f32.mxu0 0.0
        %447 = vmatmul.mubr.f32.gmra.mrb[0].mxu0 %v311
        %v448 = vpop.f32.mrb[0].mxu0
        %v449 = vadd.f32 0.0, %v448
        %v450 = vpop.f32.mrb[0].mxu0
        %451 = vmatprep.mubr.f32.mxu0 0.0
        %452 = vmatmul.mubr.f32.gmra.mrb[0].mxu0 %v314
        %v453 = vpop.f32.mrb[0].mxu0
        %v454 = vadd.f32 0.0, %v453
        %v455 = vpop.f32.mrb[0].mxu0
        %456 = vmatprep.mubr.f32.mxu0 0.0
        %457 = vmatmul.mubr.f32.gmra.mrb[0].mxu0 %v317
        %v458 = vpop.f32.mrb[0].mxu0
        %v459 = vadd.f32 0.0, %v458
        %v460 = vpop.f32.mrb[0].mxu0
        %461 = vmatprep.mubr.f32.mxu0 0.0
        %462 = vmatmul.mubr.f32.gmra.mrb[0].mxu0 %v320
        %v463 = vpop.f32.mrb[0].mxu0
        %v464 = vadd.f32 0.0, %v463
        %v465 = vpop.f32.mrb[0].mxu0
        %466 = vdwg.mxu0
        %467 = vadd.xlane.f32.xlu0 %v389
        %v468 = vpop.xlane.xlu0 %467
        %469 = vadd.xlane.f32.xlu0 %v394
        %v470 = vpop.xlane.xlu0 %469
        %471 = vadd.xlane.f32.xlu0 %v399
        %v472 = vpop.xlane.xlu0 %471
        %473 = vadd.xlane.f32.xlu0 %v404
        %v474 = vpop.xlane.xlu0 %473
        %475 = vadd.xlane.f32.xlu0 %v409
        %v476 = vpop.xlane.xlu0 %475
        %477 = vadd.xlane.f32.xlu0 %v414
        %v478 = vpop.xlane.xlu0 %477
        %479 = vadd.xlane.f32.xlu0 %v419
        %v480 = vpop.xlane.xlu0 %479
        %481 = vadd.xlane.f32.xlu0 %v424
        %v482 = vpop.xlane.xlu0 %481
        %483 = vadd.xlane.f32.xlu0 %v429
        %v484 = vpop.xlane.xlu0 %483
        %485 = vadd.xlane.f32.xlu0 %v434
        %v486 = vpop.xlane.xlu0 %485
        %487 = vadd.xlane.f32.xlu0 %v439
        %v488 = vpop.xlane.xlu0 %487
        %489 = vadd.xlane.f32.xlu0 %v444
        %v490 = vpop.xlane.xlu0 %489
        %491 = vadd.xlane.f32.xlu0 %v449
        %v492 = vpop.xlane.xlu0 %491
        %493 = vadd.xlane.f32.xlu0 %v454
        %v494 = vpop.xlane.xlu0 %493
        %495 = vadd.xlane.f32.xlu0 %v459
        %v496 = vpop.xlane.xlu0 %495
        %497 = vadd.xlane.f32.xlu0 %v464
        %v498 = vpop.xlane.xlu0 %497
        %v499 = vrcp.pop 128.0
        %v500 = vmul.f32 %v468, %v499
        %v501 = vmul.f32 %v470, %v499
        %v502 = vmul.f32 %v472, %v499
        %v503 = vmul.f32 %v474, %v499
        %v504 = vmul.f32 %v476, %v499
        %v505 = vmul.f32 %v478, %v499
        %v506 = vmul.f32 %v480, %v499
        %v507 = vmul.f32 %v482, %v499
        %v508 = vmul.f32 %v484, %v499
        %v509 = vmul.f32 %v486, %v499
        %v510 = vmul.f32 %v488, %v499
        %v511 = vmul.f32 %v490, %v499
        %v512 = vmul.f32 %v492, %v499
        %v513 = vmul.f32 %v494, %v499
        %v514 = vmul.f32 %v496, %v499
        %v515 = vmul.f32 %v498, %v499
        %v516 = vmul.f32 %v389, %v389
        %v517 = vmul.f32 %v394, %v394
        %v518 = vmul.f32 %v399, %v399
        %v519 = vmul.f32 %v404, %v404
        %v520 = vmul.f32 %v409, %v409
        %v521 = vmul.f32 %v414, %v414
        %v522 = vmul.f32 %v419, %v419
        %v523 = vmul.f32 %v424, %v424
        %v524 = vmul.f32 %v429, %v429
        %v525 = vmul.f32 %v434, %v434
        %v526 = vmul.f32 %v439, %v439
        %v527 = vmul.f32 %v444, %v444
        %v528 = vmul.f32 %v449, %v449
        %v529 = vmul.f32 %v454, %v454
        %v530 = vmul.f32 %v459, %v459
        %v531 = vmul.f32 %v464, %v464
        %532 = vadd.xlane.f32.xlu0 %v516
        %v533 = vpop.xlane.xlu0 %532
        %534 = vadd.xlane.f32.xlu0 %v517
        %v535 = vpop.xlane.xlu0 %534
        %536 = vadd.xlane.f32.xlu0 %v518
        %v537 = vpop.xlane.xlu0 %536
        %538 = vadd.xlane.f32.xlu0 %v519
        %v539 = vpop.xlane.xlu0 %538
        %540 = vadd.xlane.f32.xlu0 %v520
        %v541 = vpop.xlane.xlu0 %540
        %542 = vadd.xlane.f32.xlu0 %v521
        %v543 = vpop.xlane.xlu0 %542
        %544 = vadd.xlane.f32.xlu0 %v522
        %v545 = vpop.xlane.xlu0 %544
        %546 = vadd.xlane.f32.xlu0 %v523
        %v547 = vpop.xlane.xlu0 %546
        %548 = vadd.xlane.f32.xlu0 %v524
        %v549 = vpop.xlane.xlu0 %548
        %550 = vadd.xlane.f32.xlu0 %v525
        %v551 = vpop.xlane.xlu0 %550
        %552 = vadd.xlane.f32.xlu0 %v526
        %v553 = vpop.xlane.xlu0 %552
        %554 = vadd.xlane.f32.xlu0 %v527
        %v555 = vpop.xlane.xlu0 %554
        %556 = vadd.xlane.f32.xlu0 %v528
        %v557 = vpop.xlane.xlu0 %556
        %558 = vadd.xlane.f32.xlu0 %v529
        %v559 = vpop.xlane.xlu0 %558
        %560 = vadd.xlane.f32.xlu0 %v530
        %v561 = vpop.xlane.xlu0 %560
        %562 = vadd.xlane.f32.xlu0 %v531
        %v563 = vpop.xlane.xlu0 %562
        %v564 = vmul.f32 %v533, %v499
        %v565 = vmul.f32 %v535, %v499
        %v566 = vmul.f32 %v537, %v499
        %v567 = vmul.f32 %v539, %v499
        %v568 = vmul.f32 %v541, %v499
        %v569 = vmul.f32 %v543, %v499
        %v570 = vmul.f32 %v545, %v499
        %v571 = vmul.f32 %v547, %v499
        %v572 = vmul.f32 %v549, %v499
        %v573 = vmul.f32 %v551, %v499
        %v574 = vmul.f32 %v553, %v499
        %v575 = vmul.f32 %v555, %v499
        %v576 = vmul.f32 %v557, %v499
        %v577 = vmul.f32 %v559, %v499
        %v578 = vmul.f32 %v561, %v499
        %v579 = vmul.f32 %v563, %v499
        %v580 = vmul.f32 %v500, %v500
        %v581 = vmul.f32 %v501, %v501
        %v582 = vmul.f32 %v502, %v502
        %v583 = vmul.f32 %v503, %v503
        %v584 = vmul.f32 %v504, %v504
        %v585 = vmul.f32 %v505, %v505
        %v586 = vmul.f32 %v506, %v506
        %v587 = vmul.f32 %v507, %v507
        %v588 = vmul.f32 %v508, %v508
        %v589 = vmul.f32 %v509, %v509
        %v590 = vmul.f32 %v510, %v510
        %v591 = vmul.f32 %v511, %v511
        %v592 = vmul.f32 %v512, %v512
        %v593 = vmul.f32 %v513, %v513
        %v594 = vmul.f32 %v514, %v514
        %v595 = vmul.f32 %v515, %v515
        %v596 = vsub.f32 %v564, %v580
        %v597 = vsub.f32 %v565, %v581
        %v598 = vsub.f32 %v566, %v582
        %v599 = vsub.f32 %v567, %v583
        %v600 = vsub.f32 %v568, %v584
        %v601 = vsub.f32 %v569, %v585
        %v602 = vsub.f32 %v570, %v586
        %v603 = vsub.f32 %v571, %v587
        %v604 = vsub.f32 %v572, %v588
        %v605 = vsub.f32 %v573, %v589
        %v606 = vsub.f32 %v574, %v590
        %v607 = vsub.f32 %v575, %v591
        %v608 = vsub.f32 %v576, %v592
        %v609 = vsub.f32 %v577, %v593
        %v610 = vsub.f32 %v578, %v594
        %v611 = vsub.f32 %v579, %v595
        %v612 = vadd.f32 %v596, 1e-05
        %v613 = vadd.f32 %v597, 1e-05
        %v614 = vadd.f32 %v598, 1e-05
        %v615 = vadd.f32 %v599, 1e-05
        %v616 = vadd.f32 %v600, 1e-05
        %v617 = vadd.f32 %v601, 1e-05
        %v618 = vadd.f32 %v602, 1e-05
        %v619 = vadd.f32 %v603, 1e-05
        %v620 = vadd.f32 %v604, 1e-05
        %v621 = vadd.f32 %v605, 1e-05
        %v622 = vadd.f32 %v606, 1e-05
        %v623 = vadd.f32 %v607, 1e-05
        %v624 = vadd.f32 %v608, 1e-05
        %v625 = vadd.f32 %v609, 1e-05
        %v626 = vadd.f32 %v610, 1e-05
        %v627 = vadd.f32 %v611, 1e-05
        %v628 = vrsqrt.pop %v612
        %v629 = vrsqrt.pop %v613
        %v630 = vrsqrt.pop %v614
        %v631 = vrsqrt.pop %v615
        %v632 = vrsqrt.pop %v616
        %v633 = vrsqrt.pop %v617
        %v634 = vrsqrt.pop %v618
        %v635 = vrsqrt.pop %v619
        %v636 = vrsqrt.pop %v620
        %v637 = vrsqrt.pop %v621
        %v638 = vrsqrt.pop %v622
        %v639 = vrsqrt.pop %v623
        %v640 = vrsqrt.pop %v624
        %v641 = vrsqrt.pop %v625
        %v642 = vrsqrt.pop %v626
        %v643 = vrsqrt.pop %v627
        %v644 = vld [vmem:[%s2] sm:$0x1]
        %v646 = vlaneseq
        %v647 = vshrl.u32 %v646, 7
        %v648 = vsub.s32 0, %v647
        %v649 = vrot.slane %v644, %v648
        %v651 = vmul.f32 %v649, %v628
        %v652 = vmul.f32 %v649, %v629
        %v653 = vmul.f32 %v649, %v630
        %v654 = vmul.f32 %v649, %v631
        %v655 = vmul.f32 %v649, %v632
        %v656 = vmul.f32 %v649, %v633
        %v657 = vmul.f32 %v649, %v634
        %v658 = vmul.f32 %v649, %v635
        %v659 = vmul.f32 %v649, %v636
        %v660 = vmul.f32 %v649, %v637
        %v661 = vmul.f32 %v649, %v638
        %v662 = vmul.f32 %v649, %v639
        %v663 = vmul.f32 %v649, %v640
        %v664 = vmul.f32 %v649, %v641
        %v665 = vmul.f32 %v649, %v642
        %v666 = vmul.f32 %v649, %v643
        %v667 = vld [vmem:[%s3] sm:$0x1]
        %v668 = vmul.f32 %v500, %v651
        %v669 = vmul.f32 %v501, %v652
        %v670 = vmul.f32 %v502, %v653
        %v671 = vmul.f32 %v503, %v654
        %v672 = vmul.f32 %v504, %v655
        %v673 = vmul.f32 %v505, %v656
        %v674 = vmul.f32 %v506, %v657
        %v675 = vmul.f32 %v507, %v658
        %v676 = vmul.f32 %v508, %v659
        %v677 = vmul.f32 %v509, %v660
        %v678 = vmul.f32 %v510, %v661
        %v679 = vmul.f32 %v511, %v662
        %v680 = vmul.f32 %v512, %v663
        %v681 = vmul.f32 %v513, %v664
        %v682 = vmul.f32 %v514, %v665
        %v683 = vmul.f32 %v515, %v666
        %v685 = vlaneseq
        %v686 = vshrl.u32 %v685, 7
        %v687 = vsub.s32 0, %v686
        %v688 = vrot.slane %v667, %v687
        %v690 = vsub.f32 %v688, %v668
        %v691 = vsub.f32 %v688, %v669
        %v692 = vsub.f32 %v688, %v670
        %v693 = vsub.f32 %v688, %v671
        %v694 = vsub.f32 %v688, %v672
        %v695 = vsub.f32 %v688, %v673
        %v696 = vsub.f32 %v688, %v674
        %v697 = vsub.f32 %v688, %v675
        %v698 = vsub.f32 %v688, %v676
        %v699 = vsub.f32 %v688, %v677
        %v700 = vsub.f32 %v688, %v678
        %v701 = vsub.f32 %v688, %v679
        %v702 = vsub.f32 %v688, %v680
        %v703 = vsub.f32 %v688, %v681
        %v704 = vsub.f32 %v688, %v682
        %v705 = vsub.f32 %v688, %v683
        %v706 = vmul.f32 %v389, %v651
        %v707 = vmul.f32 %v394, %v652
        %v708 = vmul.f32 %v399, %v653
        %v709 = vmul.f32 %v404, %v654
        %v710 = vmul.f32 %v409, %v655
        %v711 = vmul.f32 %v414, %v656
        %v712 = vmul.f32 %v419, %v657
        %v713 = vmul.f32 %v424, %v658
        %v714 = vmul.f32 %v429, %v659
        %v715 = vmul.f32 %v434, %v660
        %v716 = vmul.f32 %v439, %v661
        %v717 = vmul.f32 %v444, %v662
        %v718 = vmul.f32 %v449, %v663
        %v719 = vmul.f32 %v454, %v664
        %v720 = vmul.f32 %v459, %v665
        %v721 = vmul.f32 %v464, %v666
        %v722 = vadd.f32 %v706, %v690
        %v723 = vadd.f32 %v707, %v691
        %v724 = vadd.f32 %v708, %v692
        %v725 = vadd.f32 %v709, %v693
        %v726 = vadd.f32 %v710, %v694
        %v727 = vadd.f32 %v711, %v695
        %v728 = vadd.f32 %v712, %v696
        %v729 = vadd.f32 %v713, %v697
        %v730 = vadd.f32 %v714, %v698
        %v731 = vadd.f32 %v715, %v699
        %v732 = vadd.f32 %v716, %v700
        %v733 = vadd.f32 %v717, %v701
        %v734 = vadd.f32 %v718, %v702
        %v735 = vadd.f32 %v719, %v703
        %v736 = vadd.f32 %v720, %v704
        %v737 = vadd.f32 %v721, %v705
        %v738 = vmax.f32 %v722, 0.0
        %v739 = vmax.f32 %v723, 0.0
        %v740 = vmax.f32 %v724, 0.0
        %v741 = vmax.f32 %v725, 0.0
        %v742 = vmax.f32 %v726, 0.0
        %v743 = vmax.f32 %v727, 0.0
        %v744 = vmax.f32 %v728, 0.0
        %v745 = vmax.f32 %v729, 0.0
        %v746 = vmax.f32 %v730, 0.0
        %v747 = vmax.f32 %v731, 0.0
        %v748 = vmax.f32 %v732, 0.0
        %v749 = vmax.f32 %v733, 0.0
        %v750 = vmax.f32 %v734, 0.0
        %v751 = vmax.f32 %v735, 0.0
        %v752 = vmax.f32 %v736, 0.0
        %v753 = vmax.f32 %v737, 0.0
        %v754 = vld [vmem:[%s4] sm:$0xff]
        %v755 = vld [vmem:[%s4 + $0x8] sm:$0xff]
        %v756 = vld [vmem:[%s4 + $0x10] sm:$0xff]
        %v757 = vld [vmem:[%s4 + $0x18] sm:$0xff]
        %v758 = vld [vmem:[%s4 + $0x20] sm:$0xff]
        %v759 = vld [vmem:[%s4 + $0x28] sm:$0xff]
        %v760 = vld [vmem:[%s4 + $0x30] sm:$0xff]
        %v761 = vld [vmem:[%s4 + $0x38] sm:$0xff]
        %v762 = vld [vmem:[%s4 + $0x40] sm:$0xff]
        %v763 = vld [vmem:[%s4 + $0x48] sm:$0xff]
        %v764 = vld [vmem:[%s4 + $0x50] sm:$0xff]
        %v765 = vld [vmem:[%s4 + $0x58] sm:$0xff]
        %v766 = vld [vmem:[%s4 + $0x60] sm:$0xff]
        %v767 = vld [vmem:[%s4 + $0x68] sm:$0xff]
        %v768 = vld [vmem:[%s4 + $0x70] sm:$0xff]
        %v769 = vld [vmem:[%s4 + $0x78] sm:$0xff]
        %v770 = vld [vmem:[%s5] sm:$0x1]
        %v772 = vlaneseq
        %v773 = vshrl.u32 %v772, 7
        %v774 = vsub.s32 0, %v773
        %v775 = vrot.slane %v770, %v774
        %777 = vmatprep.subr.mxu0 0.0
        %778 = vmatpush1.msra.mxu0 %v754
        %779 = vmatprep.subr.mxu0 0.0
        %780 = vmatpush1.msra.mxu0 %v755
        %781 = vmatprep.subr.mxu0 0.0
        %782 = vmatpush1.msra.mxu0 %v756
        %783 = vmatprep.subr.mxu0 0.0
        %784 = vmatpush1.msra.mxu0 %v757
        %785 = vmatprep.subr.mxu0 0.0
        %786 = vmatpush1.msra.mxu0 %v758
        %787 = vmatprep.subr.mxu0 0.0
        %788 = vmatpush1.msra.mxu0 %v759
        %789 = vmatprep.subr.mxu0 0.0
        %790 = vmatpush1.msra.mxu0 %v760
        %791 = vmatprep.subr.mxu0 0.0
        %792 = vmatpush1.msra.mxu0 %v761
        %793 = vmatprep.subr.mxu0 0.0
        %794 = vmatpush1.msra.mxu0 %v762
        %795 = vmatprep.subr.mxu0 0.0
        %796 = vmatpush1.msra.mxu0 %v763
        %797 = vmatprep.subr.mxu0 0.0
        %798 = vmatpush1.msra.mxu0 %v764
        %799 = vmatprep.subr.mxu0 0.0
        %800 = vmatpush1.msra.mxu0 %v765
        %801 = vmatprep.subr.mxu0 0.0
        %802 = vmatpush1.msra.mxu0 %v766
        %803 = vmatprep.subr.mxu0 0.0
        %804 = vmatpush1.msra.mxu0 %v767
        %805 = vmatprep.subr.mxu0 0.0
        %806 = vmatpush1.msra.mxu0 %v768
        %807 = vmatprep.subr.mxu0 0.0
        %808 = vmatpush1.msra.mxu0 %v769
        %809 = vmatprep.subr.mxu0 0.0
        %810 = vmatpush1.msra.mxu0 0.0
        %811 = vmatprep.subr.mxu0 0.0
        %812 = vmatpush1.msra.mxu0 0.0
        %813 = vmatprep.subr.mxu0 0.0
        %814 = vmatpush1.msra.mxu0 0.0
        %815 = vmatprep.subr.mxu0 0.0
        %816 = vmatpush1.msra.mxu0 0.0
        %817 = vmatprep.subr.mxu0 0.0
        %818 = vmatpush1.msra.mxu0 0.0
        %819 = vmatprep.subr.mxu0 0.0
        %820 = vmatpush1.msra.mxu0 0.0
        %821 = vmatprep.subr.mxu0 0.0
        %822 = vmatpush1.msra.mxu0 0.0
        %823 = vmatprep.subr.mxu0 0.0
        %824 = vmatpush1.msra.mxu0 0.0
        %825 = vmatprep.subr.mxu0 0.0
        %826 = vmatpush1.msra.mxu0 0.0
        %827 = vmatprep.subr.mxu0 0.0
        %828 = vmatpush1.msra.mxu0 0.0
        %829 = vmatprep.subr.mxu0 0.0
        %830 = vmatpush1.msra.mxu0 0.0
        %831 = vmatprep.subr.mxu0 0.0
        %832 = vmatpush1.msra.mxu0 0.0
        %833 = vmatprep.subr.mxu0 0.0
        %834 = vmatpush1.msra.mxu0 0.0
        %835 = vmatprep.subr.mxu0 0.0
        %836 = vmatpush1.msra.mxu0 0.0
        %837 = vmatprep.subr.mxu0 0.0
        %838 = vmatpush1.msra.mxu0 0.0
        %839 = vmatprep.subr.mxu0 0.0
        %840 = vmatpush1.msra.mxu0 0.0
        %841 = vmatprep.mubr.f32.mxu0 0.0
        %842 = vmatmul.mubr.f32.gmra.mrb[0].mxu0 %v738
        %v843 = vpop.f32.mrb[0].mxu0
        %v844 = vadd.f32 %v775, %v843
        %v845 = vpop.f32.mrb[0].mxu0
        %846 = vmatprep.mubr.f32.mxu0 0.0
        %847 = vmatmul.mubr.f32.gmra.mrb[0].mxu0 %v739
        %v848 = vpop.f32.mrb[0].mxu0
        %v849 = vadd.f32 %v775, %v848
        %v850 = vpop.f32.mrb[0].mxu0
        %851 = vmatprep.mubr.f32.mxu0 0.0
        %852 = vmatmul.mubr.f32.gmra.mrb[0].mxu0 %v740
        %v853 = vpop.f32.mrb[0].mxu0
        %v854 = vadd.f32 %v775, %v853
        %v855 = vpop.f32.mrb[0].mxu0
        %856 = vmatprep.mubr.f32.mxu0 0.0
        %857 = vmatmul.mubr.f32.gmra.mrb[0].mxu0 %v741
        %v858 = vpop.f32.mrb[0].mxu0
        %v859 = vadd.f32 %v775, %v858
        %v860 = vpop.f32.mrb[0].mxu0
        %861 = vmatprep.mubr.f32.mxu0 0.0
        %862 = vmatmul.mubr.f32.gmra.mrb[0].mxu0 %v742
        %v863 = vpop.f32.mrb[0].mxu0
        %v864 = vadd.f32 %v775, %v863
        %v865 = vpop.f32.mrb[0].mxu0
        %866 = vmatprep.mubr.f32.mxu0 0.0
        %867 = vmatmul.mubr.f32.gmra.mrb[0].mxu0 %v743
        %v868 = vpop.f32.mrb[0].mxu0
        %v869 = vadd.f32 %v775, %v868
        %v870 = vpop.f32.mrb[0].mxu0
        %871 = vmatprep.mubr.f32.mxu0 0.0
        %872 = vmatmul.mubr.f32.gmra.mrb[0].mxu0 %v744
        %v873 = vpop.f32.mrb[0].mxu0
        %v874 = vadd.f32 %v775, %v873
        %v875 = vpop.f32.mrb[0].mxu0
        %876 = vmatprep.mubr.f32.mxu0 0.0
        %877 = vmatmul.mubr.f32.gmra.mrb[0].mxu0 %v745
        %v878 = vpop.f32.mrb[0].mxu0
        %v879 = vadd.f32 %v775, %v878
        %v880 = vpop.f32.mrb[0].mxu0
        %881 = vmatprep.mubr.f32.mxu0 0.0
        %882 = vmatmul.mubr.f32.gmra.mrb[0].mxu0 %v746
        %v883 = vpop.f32.mrb[0].mxu0
        %v884 = vadd.f32 %v775, %v883
        %v885 = vpop.f32.mrb[0].mxu0
        %886 = vmatprep.mubr.f32.mxu0 0.0
        %887 = vmatmul.mubr.f32.gmra.mrb[0].mxu0 %v747
        %v888 = vpop.f32.mrb[0].mxu0
        %v889 = vadd.f32 %v775, %v888
        %v890 = vpop.f32.mrb[0].mxu0
        %891 = vmatprep.mubr.f32.mxu0 0.0
        %892 = vmatmul.mubr.f32.gmra.mrb[0].mxu0 %v748
        %v893 = vpop.f32.mrb[0].mxu0
        %v894 = vadd.f32 %v775, %v893
        %v895 = vpop.f32.mrb[0].mxu0
        %896 = vmatprep.mubr.f32.mxu0 0.0
        %897 = vmatmul.mubr.f32.gmra.mrb[0].mxu0 %v749
        %v898 = vpop.f32.mrb[0].mxu0
        %v899 = vadd.f32 %v775, %v898
        %v900 = vpop.f32.mrb[0].mxu0
        %901 = vmatprep.mubr.f32.mxu0 0.0
        %902 = vmatmul.mubr.f32.gmra.mrb[0].mxu0 %v750
        %v903 = vpop.f32.mrb[0].mxu0
        %v904 = vadd.f32 %v775, %v903
        %v905 = vpop.f32.mrb[0].mxu0
        %906 = vmatprep.mubr.f32.mxu0 0.0
        %907 = vmatmul.mubr.f32.gmra.mrb[0].mxu0 %v751
        %v908 = vpop.f32.mrb[0].mxu0
        %v909 = vadd.f32 %v775, %v908
        %v910 = vpop.f32.mrb[0].mxu0
        %911 = vmatprep.mubr.f32.mxu0 0.0
        %912 = vmatmul.mubr.f32.gmra.mrb[0].mxu0 %v752
        %v913 = vpop.f32.mrb[0].mxu0
        %v914 = vadd.f32 %v775, %v913
        %v915 = vpop.f32.mrb[0].mxu0
        %916 = vmatprep.mubr.f32.mxu0 0.0
        %917 = vmatmul.mubr.f32.gmra.mrb[0].mxu0 %v753
        %v918 = vpop.f32.mrb[0].mxu0
        %v919 = vadd.f32 %v775, %v918
        %v920 = vpop.f32.mrb[0].mxu0
        %921 = vdwg.mxu0
        %922 = vst [vmem:[%s245] sm:$0xff] %v844
        %923 = vst [vmem:[%s245 + $0x8] sm:$0xff] %v849
        %924 = vst [vmem:[%s245 + $0x10] sm:$0xff] %v854
        %925 = vst [vmem:[%s245 + $0x18] sm:$0xff] %v859
        %926 = vst [vmem:[%s245 + $0x20] sm:$0xff] %v864
        %927 = vst [vmem:[%s245 + $0x28] sm:$0xff] %v869
        %928 = vst [vmem:[%s245 + $0x30] sm:$0xff] %v874
        %929 = vst [vmem:[%s245 + $0x38] sm:$0xff] %v879
        %930 = vst [vmem:[%s245 + $0x40] sm:$0xff] %v884
        %931 = vst [vmem:[%s245 + $0x48] sm:$0xff] %v889
        %932 = vst [vmem:[%s245 + $0x50] sm:$0xff] %v894
        %933 = vst [vmem:[%s245 + $0x58] sm:$0xff] %v899
        %934 = vst [vmem:[%s245 + $0x60] sm:$0xff] %v904
        %935 = vst [vmem:[%s245 + $0x68] sm:$0xff] %v909
        %936 = vst [vmem:[%s245 + $0x70] sm:$0xff] %v914
        %937 = vst [vmem:[%s245 + $0x78] sm:$0xff] %v919
        %s938 = sand.u32 %s159, 1
        %s939 = scalar_lea.sflag [#allocation3], %s938
        %s940 = sand.u32 %s159, 1
        %s941 = smul.addr %s940, 128
        %s942 = scalar_lea.vmem [#allocation2], %s941
        // Predicated region
        $region45: #{tpu_custom_call.1} parent=43 // pred_check
          %p943 = pneg %p169
        $region46: #{tpu_custom_call.1} parent=43 // pred_check_branch
          %945 = sbr.rel (%p943) target = $region48
        $region47: #{tpu_custom_call.1} parent=43 // pred_region
          %s946 = smul.u32 16, %s20
          %s948 = ssub.s32 2048, 2048
          %949 = vsyncadd %s939, %s948
          %s950 = smul.addr %s946, 128
          %s951 = scalar_lea.hbm %s6, %s950
          %s952 = sshll.u32 %s942, 4
          %s953 = int_to_ptr.vmem [resolvable:$true] %s952
          %958 = dma.vmem_to_hbm [thread:$0]  %s953, 2048, %s951, %s939, 128, 128, 8
        $region48: #{tpu_custom_call.1} parent=43 // pred_fallthru
          _
      $region44: #{tpu_custom_call.1} parent=5 // pred_fallthru
        _
      %p959 = scmp.le.s32.totalorder 2, %s15
      // Predicated region
      $region49: #{tpu_custom_call.1} parent=5 // pred_check
        %p960 = pneg %p959
      $region50: #{tpu_custom_call.1} parent=5 // pred_check_branch
        %962 = sbr.rel (%p960) target = $region52
      $region51: #{tpu_custom_call.1} parent=5 // pred_region
        %s963 = ssub.s32 %s15, 2
        // Predicated region
        $region53: #{tpu_custom_call.1} parent=51 // pred_check
          %p964 = pneg %p175
        $region54: #{tpu_custom_call.1} parent=51 // pred_check_branch
          %966 = sbr.rel (%p964) target = $region56
        $region55: #{tpu_custom_call.1} parent=51 // pred_region
          %s967 = sand.u32 %s160, 1
          %s968 = scalar_lea.sflag [#allocation3], %s967
          %s969 = sand.u32 %s160, 1
          %s970 = smul.addr %s969, 128
          %s971 = scalar_lea.vmem [#allocation2], %s970
          %972 = dma.done %s968, 2048
        $region56: #{tpu_custom_call.1} parent=51 // pred_fallthru
          _
      $region52: #{tpu_custom_call.1} parent=5 // pred_fallthru
        _
    $region6: #{tpu_custom_call.1} parent=1 // loop_footer
      %s19 = sadd.s32 1, %s15
    $region7: #{tpu_custom_call.1} parent=1 // loop_footer_branch
      %14 = sbr.rel target = $region3
    $region8: #{tpu_custom_call.1} parent=1 // loop_exit
      _
    %973 = vsyncpa [#allocation3], 1
    %s974 = scalar_lea.sflag [#allocation3], 1
    %975 = vsyncpa %s974, 1

</llo_original>
